<compile_context>
chip_gen: v7x
topology: tpu7x:2x2x1
jax: 0.10.0
libtpu: 0.0.40
codegen_flags: <defaults>
</compile_context>

<pallas_src>
import jax
import jax.numpy as jnp
import numpy as np
from jax.experimental import pallas as pl
from jax.experimental.pallas import tpu as pltpu

IN_FEATURES = 32      # D
OUT_FEATURES = 16     # C (number of classes)
BATCH = 8             # B
TRI_MARGIN = 0.3
BALANCE_WEIGHT = 1.0
OUT_LANES = 128       # lane-dense packed scalar output width


def loss_kernel(feat_ref, xnobn_ref, w_ref, lab_col_ref, lab_row_ref, out_ref):
    B = BATCH
    C = OUT_FEATURES

    feat = feat_ref[...]          # (B, D)  feature (post-BN)
    x = xnobn_ref[...]            # (B, D)  feature_nobn
    w = w_ref[...]                # (C, D)  classifier weight (torch layout)
    lab_col = lab_col_ref[...]    # (B, 1) int32
    lab_row = lab_row_ref[...]    # (1, B) int32

    inv_b = 1.0 / B

    # ------- two small MXU matmuls, contracting on the feature dim (no transposes) -------
    logits = jax.lax.dot_general(
        feat, w, dimension_numbers=(((1,), (1,)), ((), ())),
        preferred_element_type=jnp.float32)                                # (B, C) = feature @ W^T
    gram = jax.lax.dot_general(
        x, x, dimension_numbers=(((1,), (1,)), ((), ())),
        preferred_element_type=jnp.float32)                                # (B, B) = x @ x^T

    # ------- softmax / cross-entropy branch -------
    cls_iota = jax.lax.broadcasted_iota(jnp.int32, (B, C), 1)              # (B, C)
    onehot = (cls_iota == lab_col).astype(jnp.float32)                     # (B, C)

    m = jnp.max(logits, axis=1, keepdims=True)                             # (B, 1)
    z = logits - m
    lse = jnp.log(jnp.sum(jnp.exp(z), axis=1, keepdims=True))              # (B, 1)
    ce_row = lse - jnp.sum(onehot * z, axis=1, keepdims=True)              # (B, 1) = -logprob[label]

    # exact argmax semantics (first max index under ties) == label
    argmax_idx = jnp.min(jnp.where(logits >= m, cls_iota, C),
                         axis=1, keepdims=True)                            # (B, 1) int32
    correct100 = (argmax_idx == lab_col).astype(jnp.float32) * 100.0       # (B, 1)

    # ------- triplet branch -------
    sq_col = jnp.sum(x * x, axis=1, keepdims=True)                         # (B, 1) lane reduce
    half = sq_col - gram                                                   # (B, B): sq_i - gram_ij
    dist2 = half + jnp.transpose(half)                                     # sq_i + sq_j - 2*gram_ij
    dist = jnp.sqrt(jnp.maximum(dist2, 1e-12))                             # (B, B)

    sim = lab_col == lab_row                                               # (B, B) bool
    hard_p = jnp.max(jnp.where(sim, dist, -jnp.inf), axis=1, keepdims=True)  # (B, 1)
    hard_n = jnp.min(jnp.where(sim, jnp.inf, dist), axis=1, keepdims=True)   # (B, 1)

    hinge = jnp.maximum(hard_p - hard_n + TRI_MARGIN, 0.0)                 # (B, 1)
    tri_ok = (hard_n > hard_p).astype(jnp.float32)                         # (B, 1)

    total_row = ce_row + BALANCE_WEIGHT * hinge                            # (B, 1)

    # ------- single packed lane-dense output -------
    # lanes: 0 = Softmax_loss, 1 = top1(%), 2 = tri_loss, 3 = tri_acc, 4 = loss
    lane = jax.lax.broadcasted_iota(jnp.int32, (B, OUT_LANES), 1)
    slab = (jnp.where(lane == 0, ce_row, 0.0)
            + jnp.where(lane == 1, correct100, 0.0)
            + jnp.where(lane == 2, hinge, 0.0)
            + jnp.where(lane == 3, tri_ok, 0.0)
            + jnp.where(lane == 4, total_row, 0.0))
    out_ref[...] = jnp.sum(slab, axis=0, keepdims=True) * inv_b            # (1, 128)


def softmax_triplet_loss(feature, feature_nobn, labels, w):
    """feature/feature_nobn: (B, D); labels: (B,) int; w: torch-layout (C, D)."""
    lab_col = labels.reshape(BATCH, 1).astype(jnp.int32)          # (B, 1)
    lab_row = labels.reshape(1, BATCH).astype(jnp.int32)          # (1, B)

    vmem = pl.BlockSpec(memory_space=pltpu.MemorySpace.VMEM)

    flops = (2 * BATCH * OUT_FEATURES * IN_FEATURES      # logits matmul
             + 2 * BATCH * BATCH * IN_FEATURES           # gram matmul
             + 8 * BATCH * BATCH + 8 * BATCH * OUT_FEATURES)   # elementwise / reductions
    transcendentals = BATCH * OUT_FEATURES + BATCH + BATCH * BATCH   # exp + log + sqrt
    bytes_accessed = (2 * BATCH * IN_FEATURES * 4
                      + OUT_FEATURES * IN_FEATURES * 4
                      + 2 * BATCH * 4
                      + OUT_LANES * 4)

    packed = pl.pallas_call(
        loss_kernel,
        out_shape=jax.ShapeDtypeStruct((1, OUT_LANES), jnp.float32),
        in_specs=[vmem, vmem, vmem, vmem, vmem],
        out_specs=vmem,
        cost_estimate=pl.CostEstimate(flops=flops,
                                      transcendentals=transcendentals,
                                      bytes_accessed=bytes_accessed),
    )(feature, feature_nobn, w, lab_col, lab_row)

    sm_loss = packed[0, 0]
    top1 = packed[0, 1]
    tri_loss = packed[0, 2]
    tri_acc = packed[0, 3]
    total = packed[0, 4]
    return {'Softmax_loss': sm_loss, 'top1': top1,
            'tri_loss': tri_loss, 'tri_acc': tri_acc, 'loss': total}


def reference_loss(feature, feature_nobn, labels, w):
    """Plain-JAX reference mirroring the PyTorch forward (w in torch (C, D) layout)."""
    logits = feature @ w.T
    logprob = jax.nn.log_softmax(logits, axis=1)
    ce = -jnp.mean(logprob[jnp.arange(feature.shape[0]), labels])
    top1 = jnp.mean((jnp.argmax(logits, axis=1) == labels).astype(jnp.float32)) * 100.0

    x = feature_nobn
    sq = jnp.sum(x * x, axis=1, keepdims=True)
    dist = jnp.sqrt(jnp.maximum(sq + sq.T - 2.0 * (x @ x.T), 1e-12))
    sim = labels[:, None] == labels[None, :]
    hard_p = jnp.max(jnp.where(sim, dist, -jnp.inf), axis=1)
    hard_n = jnp.min(jnp.where(sim, jnp.inf, dist), axis=1)
    tri_loss = jnp.mean(jnp.maximum(hard_p - hard_n + TRI_MARGIN, 0.0))
    tri_acc = jnp.mean((hard_n > hard_p).astype(jnp.float32))
    return {'Softmax_loss': ce, 'top1': top1, 'tri_loss': tri_loss,
            'tri_acc': tri_acc, 'loss': ce + BALANCE_WEIGHT * tri_loss}


if __name__ == "__main__":
    key = jax.random.PRNGKey(0)
    k1, k2, k3 = jax.random.split(key, 3)

    feature = jax.random.normal(k1, (BATCH, IN_FEATURES), dtype=jnp.float32)
    feature_nobn = jax.random.normal(k2, (BATCH, IN_FEATURES), dtype=jnp.float32)
    labels = jnp.array([0, 0, 1, 1, 2, 2, 3, 3], dtype=jnp.int32)

    # classifier weight: nn.init.normal_(std=0.001), torch layout (C, D)
    w = jax.random.normal(k3, (OUT_FEATURES, IN_FEATURES), dtype=jnp.float32) * 0.001

    out = softmax_triplet_loss(feature, feature_nobn, labels, w)
    jax.block_until_ready(out)

    ref = reference_loss(feature, feature_nobn, labels, w)
    for name in ('Softmax_loss', 'top1', 'tri_loss', 'tri_acc', 'loss'):
        np.testing.assert_allclose(np.asarray(out[name]), np.asarray(ref[name]),
                                   rtol=1e-4, atol=1e-5)

    print("KERNEL_OK")
</pallas_src>

<mosaic_0001>
module attributes {stable_mosaic.version = 11 : i64} {
  func.func @loss_kernel(%arg0: memref<8x32xf32, #tpu.memory_space<vmem>>, %arg1: memref<8x32xf32, #tpu.memory_space<vmem>>, %arg2: memref<16x32xf32, #tpu.memory_space<vmem>>, %arg3: memref<8x1xi32, #tpu.memory_space<vmem>>, %arg4: memref<1x8xi32, #tpu.memory_space<vmem>>, %arg5: memref<1x128xf32, #tpu.memory_space<vmem>>) attributes {dimension_semantics = [], scalar_prefetch = 0 : i64, scratch_operands = 0 : i64, tpu.core_type = #tpu.core_type<tc>} {
    %c0 = arith.constant 0 : index
    %c0_0 = arith.constant 0 : index
    %0 = vector.load %arg0[%c0, %c0_0] : memref<8x32xf32, #tpu.memory_space<vmem>>, vector<8x32xf32>
    %c0_1 = arith.constant 0 : index
    %c0_2 = arith.constant 0 : index
    %1 = vector.load %arg1[%c0_1, %c0_2] : memref<8x32xf32, #tpu.memory_space<vmem>>, vector<8x32xf32>
    %c0_3 = arith.constant 0 : index
    %c0_4 = arith.constant 0 : index
    %2 = vector.load %arg2[%c0_3, %c0_4] : memref<16x32xf32, #tpu.memory_space<vmem>>, vector<16x32xf32>
    %c0_5 = arith.constant 0 : index
    %c0_6 = arith.constant 0 : index
    %3 = vector.load %arg3[%c0_5, %c0_6] : memref<8x1xi32, #tpu.memory_space<vmem>>, vector<8x1xi32>
    %c0_7 = arith.constant 0 : index
    %c0_8 = arith.constant 0 : index
    %4 = vector.load %arg4[%c0_7, %c0_8] : memref<1x8xi32, #tpu.memory_space<vmem>>, vector<1x8xi32>
    %cst = arith.constant dense<0.000000e+00> : vector<8x16xf32>
    %5 = tpu.matmul %0, %2, %cst {dimension_numbers = #tpu.dot_dimension_numbers<[1], [1], [0], [0], [0, 0, 1, 0], [], []>} : vector<8x32xf32>, vector<16x32xf32>, vector<8x16xf32> -> vector<8x16xf32>
    %cst_9 = arith.constant dense<0.000000e+00> : vector<8x8xf32>
    %6 = tpu.matmul %1, %1, %cst_9 {dimension_numbers = #tpu.dot_dimension_numbers<[1], [1], [0], [0], [0, 0, 1, 0], [], []>} : vector<8x32xf32>, vector<8x32xf32>, vector<8x8xf32> -> vector<8x8xf32>
    %7 = tpu.iota {dimensions = array<i32: 1>} : vector<8x16xi32>
    %8 = vector.broadcast %3 : vector<8x1xi32> to vector<8x16xi32>
    %9 = arith.cmpi eq, %7, %8 : vector<8x16xi32>
    %10 = arith.extui %9 : vector<8x16xi1> to vector<8x16xi32>
    %11 = arith.sitofp %10 : vector<8x16xi32> to vector<8x16xf32>
    %cst_10 = arith.constant dense<0xFF800000> : vector<8xf32>
    %12 = vector.multi_reduction <maximumf>, %5, %cst_10 [1] : vector<8x16xf32> to vector<8xf32>
    %13 = vector.shape_cast %12 : vector<8xf32> to vector<8x1xf32>
    %14 = vector.broadcast %13 : vector<8x1xf32> to vector<8x16xf32>
    %15 = arith.subf %5, %14 : vector<8x16xf32>
    %16 = math.exp %15 : vector<8x16xf32>
    %cst_11 = arith.constant dense<0.000000e+00> : vector<8xf32>
    %17 = vector.multi_reduction <add>, %16, %cst_11 [1] : vector<8x16xf32> to vector<8xf32>
    %18 = vector.shape_cast %17 : vector<8xf32> to vector<8x1xf32>
    %19 = math.log %18 : vector<8x1xf32>
    %20 = arith.mulf %11, %15 : vector<8x16xf32>
    %cst_12 = arith.constant dense<0.000000e+00> : vector<8xf32>
    %21 = vector.multi_reduction <add>, %20, %cst_12 [1] : vector<8x16xf32> to vector<8xf32>
    %22 = vector.shape_cast %21 : vector<8xf32> to vector<8x1xf32>
    %23 = arith.subf %19, %22 : vector<8x1xf32>
    %24 = vector.broadcast %13 : vector<8x1xf32> to vector<8x16xf32>
    %25 = arith.cmpf oge, %5, %24 : vector<8x16xf32>
    %c16_i32 = arith.constant 16 : i32
    %26 = vector.broadcast %c16_i32 : i32 to vector<8x16xi32>
    %27 = arith.select %25, %7, %26 : vector<8x16xi1>, vector<8x16xi32>
    %cst_13 = arith.constant dense<2147483647> : vector<8xi32>
    %28 = vector.multi_reduction <minsi>, %27, %cst_13 [1] : vector<8x16xi32> to vector<8xi32>
    %29 = vector.shape_cast %28 : vector<8xi32> to vector<8x1xi32>
    %30 = arith.cmpi eq, %29, %3 : vector<8x1xi32>
    %31 = arith.extui %30 : vector<8x1xi1> to vector<8x1xi32>
    %32 = arith.sitofp %31 : vector<8x1xi32> to vector<8x1xf32>
    %cst_14 = arith.constant 1.000000e+02 : f32
    %33 = vector.broadcast %cst_14 : f32 to vector<8x1xf32>
    %34 = arith.mulf %32, %33 : vector<8x1xf32>
    %35 = arith.mulf %1, %1 : vector<8x32xf32>
    %cst_15 = arith.constant dense<0.000000e+00> : vector<8xf32>
    %36 = vector.multi_reduction <add>, %35, %cst_15 [1] : vector<8x32xf32> to vector<8xf32>
    %37 = vector.shape_cast %36 : vector<8xf32> to vector<8x1xf32>
    %38 = vector.broadcast %37 : vector<8x1xf32> to vector<8x8xf32>
    %39 = arith.subf %38, %6 : vector<8x8xf32>
    %40 = tpu.transpose %39, [1, 0] : vector<8x8xf32> -> vector<8x8xf32>
    %41 = arith.addf %39, %40 : vector<8x8xf32>
    %cst_16 = arith.constant 9.99999996E-13 : f32
    %42 = vector.broadcast %cst_16 : f32 to vector<8x8xf32>
    %43 = arith.maximumf %41, %42 : vector<8x8xf32>
    %44 = math.sqrt %43 : vector<8x8xf32>
    %45 = vector.broadcast %3 : vector<8x1xi32> to vector<8x8xi32>
    %46 = vector.broadcast %4 : vector<1x8xi32> to vector<8x8xi32>
    %47 = arith.cmpi eq, %45, %46 : vector<8x8xi32>
    %cst_17 = arith.constant 0xFF800000 : f32
    %48 = vector.broadcast %cst_17 : f32 to vector<8x8xf32>
    %49 = arith.select %47, %44, %48 : vector<8x8xi1>, vector<8x8xf32>
    %cst_18 = arith.constant dense<0xFF800000> : vector<8xf32>
    %50 = vector.multi_reduction <maximumf>, %49, %cst_18 [1] : vector<8x8xf32> to vector<8xf32>
    %51 = vector.shape_cast %50 : vector<8xf32> to vector<8x1xf32>
    %cst_19 = arith.constant 0x7F800000 : f32
    %52 = vector.broadcast %cst_19 : f32 to vector<8x8xf32>
    %53 = arith.select %47, %52, %44 : vector<8x8xi1>, vector<8x8xf32>
    %cst_20 = arith.constant dense<0x7F800000> : vector<8xf32>
    %54 = vector.multi_reduction <minimumf>, %53, %cst_20 [1] : vector<8x8xf32> to vector<8xf32>
    %55 = vector.shape_cast %54 : vector<8xf32> to vector<8x1xf32>
    %56 = arith.subf %51, %55 : vector<8x1xf32>
    %cst_21 = arith.constant 3.000000e-01 : f32
    %57 = vector.broadcast %cst_21 : f32 to vector<8x1xf32>
    %58 = arith.addf %56, %57 : vector<8x1xf32>
    %cst_22 = arith.constant 0.000000e+00 : f32
    %59 = vector.broadcast %cst_22 : f32 to vector<8x1xf32>
    %60 = arith.maximumf %58, %59 : vector<8x1xf32>
    %61 = arith.cmpf ogt, %55, %51 : vector<8x1xf32>
    %62 = arith.extui %61 : vector<8x1xi1> to vector<8x1xi32>
    %63 = arith.sitofp %62 : vector<8x1xi32> to vector<8x1xf32>
    %cst_23 = arith.constant 1.000000e+00 : f32
    %64 = vector.broadcast %cst_23 : f32 to vector<8x1xf32>
    %65 = arith.mulf %64, %60 : vector<8x1xf32>
    %66 = arith.addf %23, %65 : vector<8x1xf32>
    %67 = tpu.iota {dimensions = array<i32: 1>} : vector<8x128xi32>
    %c0_i32 = arith.constant 0 : i32
    %68 = vector.broadcast %c0_i32 : i32 to vector<8x128xi32>
    %69 = arith.cmpi eq, %67, %68 : vector<8x128xi32>
    %cst_24 = arith.constant 0.000000e+00 : f32
    %70 = vector.shape_cast %23 : vector<8x1xf32> to vector<8x1xf32>
    %71 = vector.broadcast %70 : vector<8x1xf32> to vector<8x128xf32>
    %72 = vector.broadcast %cst_24 : f32 to vector<8x128xf32>
    %73 = arith.select %69, %71, %72 : vector<8x128xi1>, vector<8x128xf32>
    %c1_i32 = arith.constant 1 : i32
    %74 = vector.broadcast %c1_i32 : i32 to vector<8x128xi32>
    %75 = arith.cmpi eq, %67, %74 : vector<8x128xi32>
    %cst_25 = arith.constant 0.000000e+00 : f32
    %76 = vector.shape_cast %34 : vector<8x1xf32> to vector<8x1xf32>
    %77 = vector.broadcast %76 : vector<8x1xf32> to vector<8x128xf32>
    %78 = vector.broadcast %cst_25 : f32 to vector<8x128xf32>
    %79 = arith.select %75, %77, %78 : vector<8x128xi1>, vector<8x128xf32>
    %80 = arith.addf %73, %79 : vector<8x128xf32>
    %c2_i32 = arith.constant 2 : i32
    %81 = vector.broadcast %c2_i32 : i32 to vector<8x128xi32>
    %82 = arith.cmpi eq, %67, %81 : vector<8x128xi32>
    %cst_26 = arith.constant 0.000000e+00 : f32
    %83 = vector.shape_cast %60 : vector<8x1xf32> to vector<8x1xf32>
    %84 = vector.broadcast %83 : vector<8x1xf32> to vector<8x128xf32>
    %85 = vector.broadcast %cst_26 : f32 to vector<8x128xf32>
    %86 = arith.select %82, %84, %85 : vector<8x128xi1>, vector<8x128xf32>
    %87 = arith.addf %80, %86 : vector<8x128xf32>
    %c3_i32 = arith.constant 3 : i32
    %88 = vector.broadcast %c3_i32 : i32 to vector<8x128xi32>
    %89 = arith.cmpi eq, %67, %88 : vector<8x128xi32>
    %cst_27 = arith.constant 0.000000e+00 : f32
    %90 = vector.shape_cast %63 : vector<8x1xf32> to vector<8x1xf32>
    %91 = vector.broadcast %90 : vector<8x1xf32> to vector<8x128xf32>
    %92 = vector.broadcast %cst_27 : f32 to vector<8x128xf32>
    %93 = arith.select %89, %91, %92 : vector<8x128xi1>, vector<8x128xf32>
    %94 = arith.addf %87, %93 : vector<8x128xf32>
    %c4_i32 = arith.constant 4 : i32
    %95 = vector.broadcast %c4_i32 : i32 to vector<8x128xi32>
    %96 = arith.cmpi eq, %67, %95 : vector<8x128xi32>
    %cst_28 = arith.constant 0.000000e+00 : f32
    %97 = vector.shape_cast %66 : vector<8x1xf32> to vector<8x1xf32>
    %98 = vector.broadcast %97 : vector<8x1xf32> to vector<8x128xf32>
    %99 = vector.broadcast %cst_28 : f32 to vector<8x128xf32>
    %100 = arith.select %96, %98, %99 : vector<8x128xi1>, vector<8x128xf32>
    %101 = arith.addf %94, %100 : vector<8x128xf32>
    %cst_29 = arith.constant dense<0.000000e+00> : vector<128xf32>
    %102 = vector.multi_reduction <add>, %101, %cst_29 [0] : vector<8x128xf32> to vector<128xf32>
    %103 = vector.shape_cast %102 : vector<128xf32> to vector<1x128xf32>
    %cst_30 = arith.constant 1.250000e-01 : f32
    %104 = vector.broadcast %cst_30 : f32 to vector<1x128xf32>
    %105 = arith.mulf %103, %104 : vector<1x128xf32>
    %c0_31 = arith.constant 0 : index
    %c0_32 = arith.constant 0 : index
    %106 = vector.load %arg5[%c0_31, %c0_32] : memref<1x128xf32, #tpu.memory_space<vmem>>, vector<1x128xf32>
    tpu.vector_store %arg5[%c0_31, %c0_32], %105 {strides = array<i32>} : memref<1x128xf32, #tpu.memory_space<vmem>>, vector<1x128xf32>,
    return
  }
}

</mosaic_0001>

<llo_original>
// kernel: tpu_custom_call.1
$region0: #{tpu_custom_call.1}
  #allocation0 [shape = 'u32[]', space=smem, size = 0x4, offset = 0x4, fixed_abs, tag = 'smem constant byte address 0x4 - core index']
  #allocation1 [shape = 'u32[144,128]{1,0:T(1,128)}', space=vmem, size = 0x12000, scoped, tag = 'internal scratch']
  %s0 = inlined_call_operand.hbm [shape: f32[8,32], index: 0, kind: input, shape index: {}]
  %s1 = inlined_call_operand.hbm [shape: f32[8,32], index: 1, kind: input, shape index: {}]
  %s2 = inlined_call_operand.vmem [shape: f32[16,32], index: 2, kind: input, shape index: {}]
  %s3 = inlined_call_operand.vmem [shape: s32[8,1], index: 3, kind: input, shape index: {}]
  %s4 = inlined_call_operand.vmem [shape: s32[1,8], index: 4, kind: input, shape index: {}]
  %s5 = inlined_call_operand.hbm [shape: f32[1,128], index: 5, kind: output, shape index: {}]
  %s6 = sld [smem:[#allocation0]]
  $region38: #{tpu_custom_call.1} parent=0
    _
  %s8 = ssub.s32 1, %s6
  %s9 = scalar_select 0, %s8, %s6
  $region1: #{tpu_custom_call.1} parent=0
    #allocation2 [shape = 'u8[4096]{0}', space=vmem, size = 0x1000, scoped, tag = 'input window, operand 0, single buffered']
    #allocation3 [shape = 's32[1]{0}', space=sflag, size = 0x4, scoped, tag = 'scoped memory for tpu_custom_call.1']
    #allocation4 [shape = 's32[1]{0}', space=sflag, size = 0x4, scoped, tag = 'scoped memory for tpu_custom_call.1']
    #allocation5 [shape = 'u8[4096]{0}', space=vmem, size = 0x1000, scoped, tag = 'input window, operand 1, single buffered']
    #allocation6 [shape = 's32[1]{0}', space=sflag, size = 0x4, scoped, tag = 'scoped memory for tpu_custom_call.1']
    #allocation7 [shape = 'u8[512]{0}', space=vmem, size = 0x400, scoped, tag = 'output window, operand 0, single buffered']
    %10 = vsyncpa [#allocation3], 0
    %11 = vsyncpa [#allocation6], 0
    %12 = vsyncpa [#allocation4], 0
    // Predicated region
    $region2: #{tpu_custom_call.1} parent=1 // pred_check
      _
    $region3: #{tpu_custom_call.1} parent=1 // pred_check_branch
      %14 = sbr.rel (0) target = $region5
    $region4: #{tpu_custom_call.1} parent=1 // pred_region
      %s16 = ssub.s32 128, 128
      %17 = vsyncadd [#allocation3], %s16
      %s19 = sshll.u32 [#allocation2], 4
      %s20 = int_to_ptr.vmem [resolvable:$true] %s19
      %22 = dma.hbm_to_vmem [thread:$0]  %s0, 128, %s20, [#allocation3]
    $region5: #{tpu_custom_call.1} parent=1 // pred_fallthru
      _
    // Predicated region
    $region6: #{tpu_custom_call.1} parent=1 // pred_check
      _
    $region7: #{tpu_custom_call.1} parent=1 // pred_check_branch
      %24 = sbr.rel (0) target = $region9
    $region8: #{tpu_custom_call.1} parent=1 // pred_region
      %s26 = ssub.s32 128, 128
      %27 = vsyncadd [#allocation6], %s26
      %s29 = sshll.u32 [#allocation5], 4
      %s30 = int_to_ptr.vmem [resolvable:$true] %s29
      %32 = dma.hbm_to_vmem [thread:$0]  %s1, 128, %s30, [#allocation6]
    $region9: #{tpu_custom_call.1} parent=1 // pred_fallthru
      _
    // Predicated region
    $region10: #{tpu_custom_call.1} parent=1 // pred_check
      _
    $region11: #{tpu_custom_call.1} parent=1 // pred_check_branch
      %34 = sbr.rel (0) target = $region13
    $region12: #{tpu_custom_call.1} parent=1 // pred_region
      _
    $region13: #{tpu_custom_call.1} parent=1 // pred_fallthru
      _
    // Predicated region
    $region14: #{tpu_custom_call.1} parent=1 // pred_check
      _
    $region15: #{tpu_custom_call.1} parent=1 // pred_check_branch
      %36 = sbr.rel (0) target = $region17
    $region16: #{tpu_custom_call.1} parent=1 // pred_region
      _
    $region17: #{tpu_custom_call.1} parent=1 // pred_fallthru
      _
    // Predicated region
    $region18: #{tpu_custom_call.1} parent=1 // pred_check
      _
    $region19: #{tpu_custom_call.1} parent=1 // pred_check_branch
      %38 = sbr.rel (0) target = $region21
    $region20: #{tpu_custom_call.1} parent=1 // pred_region
      _
    $region21: #{tpu_custom_call.1} parent=1 // pred_fallthru
      _
    // Predicated region
    $region22: #{tpu_custom_call.1} parent=1 // pred_check
      _
    $region23: #{tpu_custom_call.1} parent=1 // pred_check_branch
      %40 = sbr.rel (0) target = $region25
    $region24: #{tpu_custom_call.1} parent=1 // pred_region
      %41 = dma.done [#allocation3], 128
    $region25: #{tpu_custom_call.1} parent=1 // pred_fallthru
      _
    // Predicated region
    $region26: #{tpu_custom_call.1} parent=1 // pred_check
      _
    $region27: #{tpu_custom_call.1} parent=1 // pred_check_branch
      %43 = sbr.rel (0) target = $region29
    $region28: #{tpu_custom_call.1} parent=1 // pred_region
      %44 = dma.done [#allocation6], 128
    $region29: #{tpu_custom_call.1} parent=1 // pred_fallthru
      _
    %v45 = vld [vmem:[#allocation2] sm:$0xff]
    %v46 = vld [vmem:[#allocation5] sm:$0xff]
    %v47 = vld [vmem:[%s2] sm:$0xff]
    %v48 = vld [vmem:[%s2 + $0x8] sm:$0xff]
    %v49 = vld [vmem:[%s3] sm:$0xff]
    %v50 = vld [vmem:[%s4] sm:$0x1]
    %vm51 = vcmask 261120
    %v53 = vsel %vm51, %v45, 0
    %v56 = vsel %vm51, %v47, 0
    %v59 = vsel %vm51, %v48, 0
    %61 = vmatprep.subr.mxu0 0.0
    %62 = vmatpush1.xpose.msra.mxu0 %v56
    %63 = vmatprep.subr.mxu0 0.0
    %64 = vmatpush1.xpose.msra.mxu0 %v59
    %65 = vmatprep.subr.mxu0 0.0
    %66 = vmatpush1.xpose.msra.mxu0 0.0
    %67 = vmatprep.subr.mxu0 0.0
    %68 = vmatpush1.xpose.msra.mxu0 0.0
    %69 = vmatprep.subr.mxu0 0.0
    %70 = vmatpush1.xpose.msra.mxu0 0.0
    %71 = vmatprep.subr.mxu0 0.0
    %72 = vmatpush1.xpose.msra.mxu0 0.0
    %73 = vmatprep.subr.mxu0 0.0
    %74 = vmatpush1.xpose.msra.mxu0 0.0
    %75 = vmatprep.subr.mxu0 0.0
    %76 = vmatpush1.xpose.msra.mxu0 0.0
    %77 = vmatprep.subr.mxu0 0.0
    %78 = vmatpush1.xpose.msra.mxu0 0.0
    %79 = vmatprep.subr.mxu0 0.0
    %80 = vmatpush1.xpose.msra.mxu0 0.0
    %81 = vmatprep.subr.mxu0 0.0
    %82 = vmatpush1.xpose.msra.mxu0 0.0
    %83 = vmatprep.subr.mxu0 0.0
    %84 = vmatpush1.xpose.msra.mxu0 0.0
    %85 = vmatprep.subr.mxu0 0.0
    %86 = vmatpush1.xpose.msra.mxu0 0.0
    %87 = vmatprep.subr.mxu0 0.0
    %88 = vmatpush1.xpose.msra.mxu0 0.0
    %89 = vmatprep.subr.mxu0 0.0
    %90 = vmatpush1.xpose.msra.mxu0 0.0
    %91 = vmatprep.subr.mxu0 0.0
    %92 = vmatpush1.xpose.msra.mxu0 0.0
    %93 = vmatprep.subr.mxu0 0.0
    %94 = vmatpush1.xpose.msra.mxu0 0.0
    %95 = vmatprep.subr.mxu0 0.0
    %96 = vmatpush1.xpose.msra.mxu0 0.0
    %97 = vmatprep.subr.mxu0 0.0
    %98 = vmatpush1.xpose.msra.mxu0 0.0
    %99 = vmatprep.subr.mxu0 0.0
    %100 = vmatpush1.xpose.msra.mxu0 0.0
    %101 = vmatprep.subr.mxu0 0.0
    %102 = vmatpush1.xpose.msra.mxu0 0.0
    %103 = vmatprep.subr.mxu0 0.0
    %104 = vmatpush1.xpose.msra.mxu0 0.0
    %105 = vmatprep.subr.mxu0 0.0
    %106 = vmatpush1.xpose.msra.mxu0 0.0
    %107 = vmatprep.subr.mxu0 0.0
    %108 = vmatpush1.xpose.msra.mxu0 0.0
    %109 = vmatprep.subr.mxu0 0.0
    %110 = vmatpush1.xpose.msra.mxu0 0.0
    %111 = vmatprep.subr.mxu0 0.0
    %112 = vmatpush1.xpose.msra.mxu0 0.0
    %113 = vmatprep.subr.mxu0 0.0
    %114 = vmatpush1.xpose.msra.mxu0 0.0
    %115 = vmatprep.subr.mxu0 0.0
    %116 = vmatpush1.xpose.msra.mxu0 0.0
    %117 = vmatprep.subr.mxu0 0.0
    %118 = vmatpush1.xpose.msra.mxu0 0.0
    %119 = vmatprep.subr.mxu0 0.0
    %120 = vmatpush1.xpose.msra.mxu0 0.0
    %121 = vmatprep.subr.mxu0 0.0
    %122 = vmatpush1.xpose.msra.mxu0 0.0
    %123 = vmatprep.subr.mxu0 0.0
    %124 = vmatpush1.xpose.msra.mxu0 0.0
    %125 = vmatprep.mubr.f32.mxu0 0.0
    %126 = vmatmul.mubr.f32.gmra.mrb[0].mxu0 %v53
    %v127 = vpop.f32.mrb[0].mxu0
    %v128 = vadd.f32 0.0, %v127
    %v129 = vpop.f32.mrb[0].mxu0
    %130 = vdwg.mxu0
    %v132 = vsel %vm51, %v46, 0
    %134 = vmatprep.subr.mxu0 0.0
    %135 = vmatpush1.xpose.msra.mxu0 %v132
    %136 = vmatprep.subr.mxu0 0.0
    %137 = vmatpush1.xpose.msra.mxu0 0.0
    %138 = vmatprep.subr.mxu0 0.0
    %139 = vmatpush1.xpose.msra.mxu0 0.0
    %140 = vmatprep.subr.mxu0 0.0
    %141 = vmatpush1.xpose.msra.mxu0 0.0
    %142 = vmatprep.subr.mxu0 0.0
    %143 = vmatpush1.xpose.msra.mxu0 0.0
    %144 = vmatprep.subr.mxu0 0.0
    %145 = vmatpush1.xpose.msra.mxu0 0.0
    %146 = vmatprep.subr.mxu0 0.0
    %147 = vmatpush1.xpose.msra.mxu0 0.0
    %148 = vmatprep.subr.mxu0 0.0
    %149 = vmatpush1.xpose.msra.mxu0 0.0
    %150 = vmatprep.subr.mxu0 0.0
    %151 = vmatpush1.xpose.msra.mxu0 0.0
    %152 = vmatprep.subr.mxu0 0.0
    %153 = vmatpush1.xpose.msra.mxu0 0.0
    %154 = vmatprep.subr.mxu0 0.0
    %155 = vmatpush1.xpose.msra.mxu0 0.0
    %156 = vmatprep.subr.mxu0 0.0
    %157 = vmatpush1.xpose.msra.mxu0 0.0
    %158 = vmatprep.subr.mxu0 0.0
    %159 = vmatpush1.xpose.msra.mxu0 0.0
    %160 = vmatprep.subr.mxu0 0.0
    %161 = vmatpush1.xpose.msra.mxu0 0.0
    %162 = vmatprep.subr.mxu0 0.0
    %163 = vmatpush1.xpose.msra.mxu0 0.0
    %164 = vmatprep.subr.mxu0 0.0
    %165 = vmatpush1.xpose.msra.mxu0 0.0
    %166 = vmatprep.subr.mxu0 0.0
    %167 = vmatpush1.xpose.msra.mxu0 0.0
    %168 = vmatprep.subr.mxu0 0.0
    %169 = vmatpush1.xpose.msra.mxu0 0.0
    %170 = vmatprep.subr.mxu0 0.0
    %171 = vmatpush1.xpose.msra.mxu0 0.0
    %172 = vmatprep.subr.mxu0 0.0
    %173 = vmatpush1.xpose.msra.mxu0 0.0
    %174 = vmatprep.subr.mxu0 0.0
    %175 = vmatpush1.xpose.msra.mxu0 0.0
    %176 = vmatprep.subr.mxu0 0.0
    %177 = vmatpush1.xpose.msra.mxu0 0.0
    %178 = vmatprep.subr.mxu0 0.0
    %179 = vmatpush1.xpose.msra.mxu0 0.0
    %180 = vmatprep.subr.mxu0 0.0
    %181 = vmatpush1.xpose.msra.mxu0 0.0
    %182 = vmatprep.subr.mxu0 0.0
    %183 = vmatpush1.xpose.msra.mxu0 0.0
    %184 = vmatprep.subr.mxu0 0.0
    %185 = vmatpush1.xpose.msra.mxu0 0.0
    %186 = vmatprep.subr.mxu0 0.0
    %187 = vmatpush1.xpose.msra.mxu0 0.0
    %188 = vmatprep.subr.mxu0 0.0
    %189 = vmatpush1.xpose.msra.mxu0 0.0
    %190 = vmatprep.subr.mxu0 0.0
    %191 = vmatpush1.xpose.msra.mxu0 0.0
    %192 = vmatprep.subr.mxu0 0.0
    %193 = vmatpush1.xpose.msra.mxu0 0.0
    %194 = vmatprep.subr.mxu0 0.0
    %195 = vmatpush1.xpose.msra.mxu0 0.0
    %196 = vmatprep.subr.mxu0 0.0
    %197 = vmatpush1.xpose.msra.mxu0 0.0
    %198 = vmatprep.mubr.f32.mxu0 0.0
    %199 = vmatmul.mubr.f32.gmra.mrb[0].mxu0 %v132
    %v200 = vpop.f32.mrb[0].mxu0
    %v201 = vadd.f32 0.0, %v200
    %v202 = vpop.f32.mrb[0].mxu0
    %203 = vdwg.mxu0
    %v204 = vlaneseq
    %v205 = vand.u32 %v204, 127
    %206 = vset.pattern.permute.xlu0 0
    %207 = vperm.xlu0 %206, %v49
    %v208 = vpop.permute.xlu0 %207
    %vm209 = vcmp.eq.s32.totalorder %v205, %v208
    %v210 = vsel %vm209, 1, 0
    %v211 = vcvt.s32.f32 %v210
    %vm212 = vcmask 130048
    %v213 = vsel %vm212, %v128, -inf
    %214 = vmax.xlane.f32.xlu0 %v213
    %v215 = vpop.xlane.xlu0 %214
    %v216 = vsub.f32 %v128, %v215
    %v217 = vmul.f32 %v216, 1.442695
    %v218 = vpow.pop %v217
    %v219 = vsel %vm212, %v218, 0.0
    %220 = vadd.xlane.f32.xlu0 %v219
    %v221 = vpop.xlane.xlu0 %220
    %v222 = vlog2.pop %v221
    %v223 = vmul.f32 %v222, 0.6931472
    %v224 = vmul.f32 %v211, %v216
    %v225 = vsel %vm212, %v224, 0.0
    %226 = vadd.xlane.f32.xlu0 %v225
    %v227 = vpop.xlane.xlu0 %226
    %v228 = vsub.f32 %v223, %v227
    %vm229 = vcmp.ge.f32.partialorder %v128, %v215
    %v230 = vsel %vm229, %v205, 16
    %v231 = vsel %vm212, %v230, 2147483647
    %v232 = vand.u32 %v231, 65535
    %v233 = vshra.s32 %v231, 16
    %v234 = vcvt.s32.f32 %v232
    %v235 = vcvt.s32.f32 %v233
    %236 = vmin.xlane.f32.xlu0 %v235
    %v237 = vpop.xlane.xlu0 %236
    %vm238 = vcmp.eq.f32.partialorder %v235, %v237
    %v239 = vsel %vm238, %v234, inf
    %240 = vmin.xlane.f32.xlu0 %v239
    %v241 = vpop.xlane.xlu0 %240
    %v242 = vcvt.f32.s32 %v241
    %v243 = vcvt.f32.s32 %v237
    %v244 = vshll.u32 %v243, 16
    %v245 = vadd.s32 %v244, %v242
    %vm246 = vcmp.eq.s32.totalorder %v245, %v49
    %v247 = vsel %vm246, 1, 0
    %v248 = vcvt.s32.f32 %v247
    %v249 = vmul.f32 %v248, 100.0
    %v250 = vmul.f32 %v46, %v46
    %v251 = vsel %vm51, %v250, 0.0
    %252 = vadd.xlane.f32.xlu0 %v251
    %v253 = vpop.xlane.xlu0 %252
    %v254 = vsub.f32 %v253, %v201
    %255 = vxpose.xlu0.b32.start [1/16] %v254, 128
    %256 = vxpose.xlu0.b32.cont [2/16] 0.0, 128
    %257 = vxpose.xlu0.b32.cont [3/16] 0.0, 128
    %258 = vxpose.xlu0.b32.cont [4/16] 0.0, 128
    %259 = vxpose.xlu0.b32.cont [5/16] 0.0, 128
    %260 = vxpose.xlu0.b32.cont [6/16] 0.0, 128
    %261 = vxpose.xlu0.b32.cont [7/16] 0.0, 128
    %262 = vxpose.xlu0.b32.cont [8/16] 0.0, 128
    %263 = vxpose.xlu0.b32.cont [9/16] 0.0, 128
    %264 = vxpose.xlu0.b32.cont [10/16] 0.0, 128
    %265 = vxpose.xlu0.b32.cont [11/16] 0.0, 128
    %266 = vxpose.xlu0.b32.cont [12/16] 0.0, 128
    %267 = vxpose.xlu0.b32.cont [13/16] 0.0, 128
    %268 = vxpose.xlu0.b32.cont [14/16] 0.0, 128
    %269 = vxpose.xlu0.b32.cont [15/16] 0.0, 128
    %270 = vxpose.xlu0.b32.end [16/16] 0.0, 128
    %v271 = vpop.trf.xlu0
    %v272 = vpop.trf.xlu0
    %v273 = vpop.trf.xlu0
    %v274 = vpop.trf.xlu0
    %v275 = vpop.trf.xlu0
    %v276 = vpop.trf.xlu0
    %v277 = vpop.trf.xlu0
    %v278 = vpop.trf.xlu0
    %v279 = vpop.trf.xlu0
    %v280 = vpop.trf.xlu0
    %v281 = vpop.trf.xlu0
    %v282 = vpop.trf.xlu0
    %v283 = vpop.trf.xlu0
    %v284 = vpop.trf.xlu0
    %v285 = vpop.trf.xlu0
    %v286 = vpop.trf.xlu0
    %v287 = vadd.f32 %v254, %v271
    %v288 = vmax.f32 %v287, 1e-12
    %v289 = vrsqrt.pop %v288
    %v290 = vmul.f32 %v288, %v289
    %vm291 = vcmp.eq.f32.partialorder %v288, inf
    %v292 = vsel %vm291, %v288, %v290
    %vm293 = vcmp.eq.f32.partialorder %v288, 0.0
    %v294 = vand.u32 %v288, 2147483648
    %v295 = vsel %vm293, %v294, %v292
    %v296 = vlaneseq
    %v297 = vshrl.u32 %v296, 7
    %v298 = vsub.s32 0, %v297
    %v299 = vrot.slane %v50, %v298
    %vm300 = vcmp.eq.s32.totalorder %v208, %v299
    %v301 = vsel %vm300, %v295, -inf
    %vm302 = vcmask 64512
    %v303 = vsel %vm302, %v301, -inf
    %304 = vmax.xlane.f32.xlu0 %v303
    %v305 = vpop.xlane.xlu0 %304
    %v306 = vsel %vm300, inf, %v295
    %v307 = vsel %vm302, %v306, inf
    %308 = vmin.xlane.f32.xlu0 %v307
    %v309 = vpop.xlane.xlu0 %308
    %v310 = vsub.f32 %v305, %v309
    %v311 = vadd.f32 %v310, 0.3
    %v312 = vmax.f32 %v311, 0.0
    %vm313 = vcmp.gt.f32.partialorder %v309, %v305
    %v314 = vsel %vm313, 1, 0
    %v315 = vcvt.s32.f32 %v314
    %v316 = vadd.f32 %v228, %v312
    %vm317 = vcmp.eq.s32.totalorder %v205, 0
    %v318 = vsel %vm317, %v228, 0.0
    %vm319 = vcmp.eq.s32.totalorder %v205, 1
    %321 = vset.pattern.permute.xlu0 0
    %322 = vperm.xlu0 %321, %v249
    %v323 = vpop.permute.xlu0 %322
    %v325 = vsel %vm319, %v323, 0.0
    %v326 = vadd.f32 %v318, %v325
    %vm327 = vcmp.eq.s32.totalorder %v205, 2
    %v328 = vsel %vm327, %v312, 0.0
    %v329 = vadd.f32 %v326, %v328
    %vm330 = vcmp.eq.s32.totalorder %v205, 3
    %v331 = vsel %vm330, %v315, 0.0
    %v332 = vadd.f32 %v329, %v331
    %vm333 = vcmp.eq.s32.totalorder %v205, 4
    %v334 = vsel %vm333, %v316, 0.0
    %v335 = vadd.f32 %v332, %v334
    %v336 = vrot.slane %v335, 4
    %v337 = vadd.f32 %v335, %v336
    %v338 = vrot.slane %v337, 2
    %v339 = vadd.f32 %v337, %v338
    %v340 = vrot.slane %v339, 1
    %v341 = vadd.f32 %v339, %v340
    %v342 = vmul.f32 %v341, 0.125
    %343 = vst [vmem:[#allocation7] sm:$0x1] %v342
    // Predicated region
    $region30: #{tpu_custom_call.1} parent=1 // pred_check
      _
    $region31: #{tpu_custom_call.1} parent=1 // pred_check_branch
      %345 = sbr.rel (0) target = $region33
    $region32: #{tpu_custom_call.1} parent=1 // pred_region
      %s347 = ssub.s32 16, 16
      %348 = vsyncadd [#allocation4], %s347
      %s350 = sshll.u32 [#allocation7], 4
      %s351 = int_to_ptr.vmem [resolvable:$true] %s350
      %353 = dma.vmem_to_hbm [thread:$0]  %s351, 16, %s5, [#allocation4]
    $region33: #{tpu_custom_call.1} parent=1 // pred_fallthru
      _
    // Predicated region
    $region34: #{tpu_custom_call.1} parent=1 // pred_check
      _
    $region35: #{tpu_custom_call.1} parent=1 // pred_check_branch
      %355 = sbr.rel (0) target = $region37
    $region36: #{tpu_custom_call.1} parent=1 // pred_region
      %356 = dma.done [#allocation4], 16
    $region37: #{tpu_custom_call.1} parent=1 // pred_fallthru
      _
    %357 = vsyncpa [#allocation3], 1
    %358 = vsyncpa [#allocation6], 1
    %359 = vsyncpa [#allocation4], 1

</llo_original>
